<compile_context>
chip_gen: v7x
topology: tpu7x:2x2x1
jax: 0.10.0
libtpu: 0.0.40
codegen_flags: <defaults>
</compile_context>

<pallas_src>
import jax
import jax.numpy as jnp
import numpy as np
from jax.experimental import pallas as pl
from jax.experimental.pallas import tpu as pltpu

HID = 10          # LSTM hidden size  (nn.LSTM(*, 10, 1, bidirectional=True))
H2 = 2 * HID      # per-gate width (fwd|bwd)
LANES = 128


# ---------------------------------------------------------------------------
# Kernel
# ---------------------------------------------------------------------------
def _make_kernel(offsets):
    """offsets: name -> (row0, rows) of a full-128-lane piece in the param slab."""

    def kernel(t_ref, act_ref, slab_ref, out_ref):
        def sl(name):                                 # full-lane (unmasked) load
            r0, r = offsets[name]
            return slab_ref[r0:r0 + r, :]

        def mm(a, b):
            return jnp.dot(a, b, preferred_element_type=jnp.float32)

        def lstm_out(g):                              # g: (TB, 60) = [i | g | o]
            i = jax.nn.sigmoid(g[:, 0:H2])
            gg = jnp.tanh(g[:, H2:2 * H2])
            o = jax.nn.sigmoid(g[:, 2 * H2:3 * H2])
            return o * jnp.tanh(i * gg)               # f-gate * c0 == 0 drops out

        act = act_ref[...]                                            # (TB, 128)

        # Both LSTMs in one K=128 gate matmul: cols 0:60 grad, 60:120 loss.
        gates = mm(act, sl("gw")) + sl("gb")                          # (TB, 128)
        grad_h = lstm_out(gates[:, 0:60])                             # (TB, 20)
        loss_h = lstm_out(gates[:, 60:120])                           # (TB, 20)

        # deepsets h1: block-distributed matmuls; col 20 of each weight block
        # is an all-ones column so the per-row feature sum rides the MXU.
        part = (mm(act, sl("h1p")) + mm(grad_h, sl("h1g"))
                + mm(loss_h, sl("h1l")))                              # (TB, 128)
        x_w1 = part[:, 0:20]                                          # x @ h1_w
        row_sum = part[:, 20:21]                                      # sum(x, feat)

        tm1 = (t_ref[0] - 1).astype(jnp.float32).reshape(1, 1)        # real T - 1
        xc_w1 = (row_sum * sl("h1cs")[:, 0:20] - x_w1) * (1.0 / tm1)
        hmid = jnp.tanh(xc_w1 + sl("h1b")[:, 0:20])                   # (TB, 20)
        m = mm(hmid, sl("h2w")) + sl("h2b")                           # (TB, 128); cols 10: are 0

        # fc1 over [x | m] as block-distributed matmuls (no concatenation).
        z1p = (mm(act, sl("f1p")) + mm(grad_h, sl("f1g"))
               + mm(loss_h, sl("f1l")) + mm(m, sl("f1m")) + sl("f1b"))
        z1 = jnp.tanh(z1p[:, 0:20])                                   # (TB, 20)

        # fc2 padded to 128 lanes -> lane-dense store; wrapper slices lane 0.
        out_ref[...] = mm(z1, sl("f2w")) + sl("f2b")                  # (TB, 128)

    return kernel


# ---------------------------------------------------------------------------
# Host-side parameter packing: one f32 (rows, 128) slab, 8-row-aligned slots,
# every piece zero-padded to the full 128 lanes (full-lane unmasked loads).
# NOTE: real torch LSTM weights would need gate reorder [i,f,g,o]->[i,g,o],
# weight_ih transposed to (in, H), fwd/bwd concatenated per gate, b_hh folded
# into the bias; init_params below synthesizes weights already in that form.
# ---------------------------------------------------------------------------
def pack_params(params, n_grad):
    f32 = np.float32
    N = n_grad
    gw = np.asarray(params["gw"], f32)      # (N, 60)
    gb = np.asarray(params["gb"], f32)      # (1, 60)
    lw = np.asarray(params["lw"], f32)      # (1, 60)
    lb = np.asarray(params["lb"], f32)      # (1, 60)
    h1w = np.asarray(params["h1_w"], f32)   # (45, 20)
    h1b = np.asarray(params["h1_b"], f32)   # (1, 20)
    h2w = np.asarray(params["h2_w"], f32)   # (20, 10)
    h2b = np.asarray(params["h2_b"], f32)   # (1, 10)
    f1w = np.asarray(params["f1_w"], f32)   # (55, 20)
    f1b = np.asarray(params["f1_b"], f32)   # (1, 20)
    f2w = np.asarray(params["f2_w"], f32)   # (20, 1)
    f2b = np.asarray(params["f2_b"], f32)   # (1, 1)

    # Fused gate weight for both LSTMs, K matched to the 128-lane act row.
    GW = np.zeros((LANES, LANES), f32)
    GW[5:5 + N, 0:60] = gw                 # grad feats live in act lanes 5:5+N
    GW[5 + N, 60:120] = lw[0]              # loss lives in act lane 5+N
    GB = np.zeros((1, LANES), f32)
    GB[0, 0:60] = gb[0]
    GB[0, 60:120] = lb[0]

    def ones_col(block, nrows):            # col 20 := 1 over the real rows
        block[:nrows, 20] = 1.0
        return block

    H1P = np.zeros((LANES, LANES), f32); H1P[0:5, 0:20] = h1w[0:5]; ones_col(H1P, 5)
    H1G = np.zeros((20, LANES), f32);    H1G[:, 0:20] = h1w[5:25];  ones_col(H1G, 20)
    H1L = np.zeros((20, LANES), f32);    H1L[:, 0:20] = h1w[25:45]; ones_col(H1L, 20)
    H1CS = np.zeros((1, LANES), f32);    H1CS[0, 0:20] = h1w.sum(axis=0)
    H1B = np.zeros((1, LANES), f32);     H1B[0, 0:20] = h1b[0]

    H2W = np.zeros((20, LANES), f32);    H2W[:, 0:10] = h2w
    H2B = np.zeros((1, LANES), f32);     H2B[0, 0:10] = h2b[0]

    F1P = np.zeros((LANES, LANES), f32); F1P[0:5, 0:20] = f1w[0:5]
    F1G = np.zeros((20, LANES), f32);    F1G[:, 0:20] = f1w[5:25]
    F1L = np.zeros((20, LANES), f32);    F1L[:, 0:20] = f1w[25:45]
    F1M = np.zeros((LANES, LANES), f32); F1M[0:10, 0:20] = f1w[45:55]
    F1B = np.zeros((1, LANES), f32);     F1B[0, 0:20] = f1b[0]

    F2W = np.zeros((20, LANES), f32);    F2W[:, 0:1] = f2w
    F2B = np.zeros((1, LANES), f32);     F2B[0, 0:1] = f2b[0]

    pieces = [("gw", GW), ("gb", GB),
              ("h1p", H1P), ("h1g", H1G), ("h1l", H1L), ("h1cs", H1CS), ("h1b", H1B),
              ("h2w", H2W), ("h2b", H2B),
              ("f1p", F1P), ("f1g", F1G), ("f1l", F1L), ("f1m", F1M), ("f1b", F1B),
              ("f2w", F2W), ("f2b", F2B)]

    offsets, row = {}, 0
    for name, a in pieces:
        offsets[name] = (row, a.shape[0])
        row += ((a.shape[0] + 7) // 8) * 8          # 8-sublane-aligned slots
    slab = np.zeros((max(row, 8), LANES), f32)
    for name, a in pieces:
        r0 = offsets[name][0]
        slab[r0:r0 + a.shape[0], :] = a
    return jnp.asarray(slab), offsets


# ---------------------------------------------------------------------------
# Forward wrapper
# ---------------------------------------------------------------------------
def _bucket_rows(t, block_rows):
    """Pad T to power-of-two buckets (then block multiples) to bound recompiles."""
    t = max(int(t), 8)
    if t <= block_rows:
        p = 8
        while p < t:
            p *= 2
        return p
    return ((t + block_rows - 1) // block_rows) * block_rows


def scheduler_forward(slab, offsets, emb, l, grad_feats, pt, *, block_rows=256):
    """l: (T,) task losses; grad_feats: (T, N) == input[0].reshape(T, -1); pt: (T,) int."""
    T = int(l.shape[0])
    N = int(grad_feats.shape[1])
    assert T >= 2, "deepsets term divides by (T - 1)"
    assert 6 + N <= LANES, "activation slab assumes 5 + N + 1 <= 128 lanes"

    T_pad = _bucket_rows(T, block_rows)
    TB = min(block_rows, T_pad)
    grid = (T_pad // TB,)

    # Glue: nn.Embedding(100, 5) gather stays in plain JAX.
    pt_emb = jnp.take(emb, pt.astype(jnp.int32), axis=0).astype(jnp.float32)   # (T, 5)
    act = jnp.concatenate(
        [pt_emb,
         grad_feats.astype(jnp.float32),
         l.reshape(T, 1).astype(jnp.float32),
         jnp.zeros((T, LANES - (6 + N)), jnp.float32)], axis=1)                # (T, 128)
    act = jnp.pad(act, ((0, T_pad - T), (0, 0)))     # padded rows are independent

    t_scalar = jnp.array([T], jnp.int32)             # runtime T -> no recompile

    out = pl.pallas_call(
        _make_kernel(offsets),
        out_shape=jax.ShapeDtypeStruct((T_pad, LANES), jnp.float32),
        grid_spec=pltpu.PrefetchScalarGridSpec(
            num_scalar_prefetch=1,
            grid=grid,
            in_specs=[pl.BlockSpec((TB, LANES), lambda i, t: (i, 0)),
                      pl.BlockSpec(slab.shape, lambda i, t: (0, 0))],
            out_specs=pl.BlockSpec((TB, LANES), lambda i, t: (i, 0))),
        compiler_params=pltpu.CompilerParams(
            dimension_semantics=("parallel",)),       # shards row blocks on v7x's 2 TCs
    )(t_scalar, act, slab)
    return out[:T, :1]                                                         # (T, 1)


# ---------------------------------------------------------------------------
# Synthetic parameters matching the PyTorch module shapes
# ---------------------------------------------------------------------------
def init_params(key, n_grad):
    ks = iter(jax.random.split(key, 64))

    def unif(shape, scale):
        return jax.random.uniform(next(ks), shape, jnp.float32, -scale, scale)

    emb = jax.random.normal(next(ks), (100, 5), jnp.float32)   # nn.Embedding(100, 5)

    def bilstm_packed(in_dim):
        # torch gate order is [i, f, g, o]; f is unused (c0 == 0) so omitted.
        # h0 == 0 -> W_hh never contributes, but b_hh still adds: fold into bias.
        s = 1.0 / np.sqrt(HID)
        w_cols, b_cols = [], []
        for _ in ("i", "g", "o"):
            wf = unif((in_dim, HID), s)                 # forward direction
            wb = unif((in_dim, HID), s)                 # backward direction
            bf = unif((HID,), s) + unif((HID,), s)      # b_ih + b_hh (fwd)
            bb = unif((HID,), s) + unif((HID,), s)      # b_ih + b_hh (bwd)
            w_cols.append(jnp.concatenate([wf, wb], axis=1))       # (in, 2H)
            b_cols.append(jnp.concatenate([bf, bb]))               # (2H,)
        return (jnp.concatenate(w_cols, axis=1),                   # (in, 60)
                jnp.concatenate(b_cols)[None, :])                  # (1, 60)

    lw, lb = bilstm_packed(1)          # loss_lstm: input size 1
    gw, gb = bilstm_packed(n_grad)     # grad_lstm: input size N

    def linear(fan_in, fan_out):
        s = 1.0 / np.sqrt(fan_in)
        return unif((fan_in, fan_out), s), unif((fan_out,), s)[None, :]

    h1_w, h1_b = linear(45, 20)   # self.h[0]
    h2_w, h2_b = linear(20, 10)   # self.h[2]
    f1_w, f1_b = linear(55, 20)   # self.fc1 (use_deepsets=True)
    f2_w, f2_b = linear(20, 1)    # self.fc2

    return dict(emb=emb, lw=lw, lb=lb, gw=gw, gb=gb,
                h1_w=h1_w, h1_b=h1_b, h2_w=h2_w, h2_b=h2_b,
                f1_w=f1_w, f1_b=f1_b, f2_w=f2_w, f2_b=f2_b)


# ---------------------------------------------------------------------------
# float64 numpy reference (literal transcription of Scheduler.forward)
# ---------------------------------------------------------------------------
def scheduler_reference(params, l, grad_feats, pt):
    p = {k: np.asarray(v, np.float64) for k, v in params.items()}
    l = np.asarray(l, np.float64)
    g = np.asarray(grad_feats, np.float64)
    T = l.shape[0]
    emb = p["emb"][np.asarray(pt)]

    def sigmoid(x):
        return 1.0 / (1.0 + np.exp(-x))

    def bilstm(x, w, b):
        gates = x @ w + b
        i = sigmoid(gates[:, 0:H2])
        gg = np.tanh(gates[:, H2:2 * H2])
        o = sigmoid(gates[:, 2 * H2:3 * H2])
        return o * np.tanh(i * gg)

    loss_h = bilstm(l.reshape(T, 1), p["lw"], p["lb"])
    grad_h = bilstm(g, p["gw"], p["gb"])
    x = np.concatenate([emb, grad_h, loss_h], axis=1)                # (T, 45)
    # torch.sum(x, dim=1) sums the 45 features (verified against the spec).
    x_c = (x.sum(1, keepdims=True) - x) / (T - 1)
    m = np.tanh(x_c @ p["h1_w"] + p["h1_b"]) @ p["h2_w"] + p["h2_b"]
    xx = np.concatenate([x, m], axis=1)                              # (T, 55)
    return np.tanh(xx @ p["f1_w"] + p["f1_b"]) @ p["f2_w"] + p["f2_b"]


if __name__ == "__main__":
    # TODO(synk): sample_task / add_new_tasks / compute_loss / get_weight plumbing
    # (Categorical sampling, python task buffer, .cuda()/.detach(), external maml)
    # are host-side utilities with no kernel equivalent; only forward() is kernelized.
    N = 4                  # N = len(grad_indexes) (grad_lstm input size)
    key = jax.random.PRNGKey(0)
    kp, kl, kg = jax.random.split(key, 3)

    params = init_params(kp, N)
    slab, offsets = pack_params(params, N)

    ok = True
    for T in (8, 13):      # 13 exercises the row-padding / bucketing path
        kl_t, kg_t = jax.random.split(jax.random.fold_in(kl, T))
        l = jax.random.uniform(kl_t, (T,), jnp.float32, 0.0, 2.0)              # task losses
        grad_feats = jax.random.uniform(kg_t, (T, N), jnp.float32, -1.0, 1.0)  # cosine sims
        pt = jnp.full((T,), 37, dtype=jnp.int32)                               # pt per task

        out = jax.block_until_ready(
            scheduler_forward(slab, offsets, params["emb"], l, grad_feats, pt))
        ref = scheduler_reference(params, l, grad_feats, pt)

        assert out.shape == (T, 1)
        np.testing.assert_allclose(np.asarray(out), ref.astype(np.float32),
                                   rtol=5e-3, atol=5e-3)
    if ok:
        print("KERNEL_OK")
</pallas_src>

<mosaic_0001>
module attributes {stable_mosaic.version = 11 : i64} {
  func.func @kernel(%arg0: i32, %arg1: memref<1xi32, #tpu.memory_space<smem>>, %arg2: memref<8x128xf32, #tpu.memory_space<vmem>>, %arg3: memref<704x128xf32, #tpu.memory_space<vmem>>, %arg4: memref<8x128xf32, #tpu.memory_space<vmem>>) attributes {dimension_semantics = [#tpu.dimension_semantics<parallel>], iteration_bounds = array<i64: 1>, scalar_prefetch = 1 : i64, scratch_operands = 0 : i64, tpu.core_type = #tpu.core_type<tc>, window_params = [{transform_indices = @transform_0, window_bounds = array<i64: 8, 128>}, {pipeline_mode = #tpu.pipeline_mode<synchronous>, transform_indices = @transform_1, window_bounds = array<i64: 704, 128>}, {transform_indices = @transform_2, window_bounds = array<i64: 8, 128>}]} {
    %c0 = arith.constant 0 : index
    %c0_0 = arith.constant 0 : index
    %0 = vector.load %arg2[%c0, %c0_0] : memref<8x128xf32, #tpu.memory_space<vmem>>, vector<8x128xf32>
    %c0_1 = arith.constant 0 : index
    %c0_2 = arith.constant 0 : index
    %1 = vector.load %arg3[%c0_1, %c0_2] : memref<704x128xf32, #tpu.memory_space<vmem>>, vector<128x128xf32>
    %cst = arith.constant dense<0.000000e+00> : vector<8x128xf32>
    %2 = tpu.matmul %0, %1, %cst {dimension_numbers = #tpu.dot_dimension_numbers<[1], [0], [0], [1], [0, 0, 1, 1], [], []>} : vector<8x128xf32>, vector<128x128xf32>, vector<8x128xf32> -> vector<8x128xf32>
    %c128 = arith.constant 128 : index
    %c0_3 = arith.constant 0 : index
    %3 = vector.load %arg3[%c128, %c0_3] : memref<704x128xf32, #tpu.memory_space<vmem>>, vector<1x128xf32>
    %4 = vector.broadcast %3 : vector<1x128xf32> to vector<8x128xf32>
    %5 = arith.addf %2, %4 : vector<8x128xf32>
    %6 = vector.extract_strided_slice %5 {offsets = [0, 0], sizes = [8, 60], strides = [1, 1]} : vector<8x128xf32> to vector<8x60xf32>
    %7 = vector.extract_strided_slice %6 {offsets = [0, 0], sizes = [8, 20], strides = [1, 1]} : vector<8x60xf32> to vector<8x20xf32>
    %8 = arith.negf %7 : vector<8x20xf32>
    %9 = math.exp %8 : vector<8x20xf32>
    %cst_4 = arith.constant 1.000000e+00 : f32
    %10 = vector.broadcast %cst_4 : f32 to vector<8x20xf32>
    %11 = arith.addf %10, %9 : vector<8x20xf32>
    %12 = arith.divf %10, %11 : vector<8x20xf32>
    %13 = vector.extract_strided_slice %6 {offsets = [0, 20], sizes = [8, 20], strides = [1, 1]} : vector<8x60xf32> to vector<8x20xf32>
    %14 = math.tanh %13 : vector<8x20xf32>
    %15 = vector.extract_strided_slice %6 {offsets = [0, 40], sizes = [8, 20], strides = [1, 1]} : vector<8x60xf32> to vector<8x20xf32>
    %16 = arith.negf %15 : vector<8x20xf32>
    %17 = math.exp %16 : vector<8x20xf32>
    %cst_5 = arith.constant 1.000000e+00 : f32
    %18 = vector.broadcast %cst_5 : f32 to vector<8x20xf32>
    %19 = arith.addf %18, %17 : vector<8x20xf32>
    %20 = arith.divf %18, %19 : vector<8x20xf32>
    %21 = arith.mulf %12, %14 : vector<8x20xf32>
    %22 = math.tanh %21 : vector<8x20xf32>
    %23 = arith.mulf %20, %22 : vector<8x20xf32>
    %24 = vector.extract_strided_slice %5 {offsets = [0, 60], sizes = [8, 60], strides = [1, 1]} : vector<8x128xf32> to vector<8x60xf32>
    %25 = vector.extract_strided_slice %24 {offsets = [0, 0], sizes = [8, 20], strides = [1, 1]} : vector<8x60xf32> to vector<8x20xf32>
    %26 = arith.negf %25 : vector<8x20xf32>
    %27 = math.exp %26 : vector<8x20xf32>
    %cst_6 = arith.constant 1.000000e+00 : f32
    %28 = vector.broadcast %cst_6 : f32 to vector<8x20xf32>
    %29 = arith.addf %28, %27 : vector<8x20xf32>
    %30 = arith.divf %28, %29 : vector<8x20xf32>
    %31 = vector.extract_strided_slice %24 {offsets = [0, 20], sizes = [8, 20], strides = [1, 1]} : vector<8x60xf32> to vector<8x20xf32>
    %32 = math.tanh %31 : vector<8x20xf32>
    %33 = vector.extract_strided_slice %24 {offsets = [0, 40], sizes = [8, 20], strides = [1, 1]} : vector<8x60xf32> to vector<8x20xf32>
    %34 = arith.negf %33 : vector<8x20xf32>
    %35 = math.exp %34 : vector<8x20xf32>
    %cst_7 = arith.constant 1.000000e+00 : f32
    %36 = vector.broadcast %cst_7 : f32 to vector<8x20xf32>
    %37 = arith.addf %36, %35 : vector<8x20xf32>
    %38 = arith.divf %36, %37 : vector<8x20xf32>
    %39 = arith.mulf %30, %32 : vector<8x20xf32>
    %40 = math.tanh %39 : vector<8x20xf32>
    %41 = arith.mulf %38, %40 : vector<8x20xf32>
    %c136 = arith.constant 136 : index
    %c0_8 = arith.constant 0 : index
    %42 = vector.load %arg3[%c136, %c0_8] : memref<704x128xf32, #tpu.memory_space<vmem>>, vector<128x128xf32>
    %cst_9 = arith.constant dense<0.000000e+00> : vector<8x128xf32>
    %43 = tpu.matmul %0, %42, %cst_9 {dimension_numbers = #tpu.dot_dimension_numbers<[1], [0], [0], [1], [0, 0, 1, 1], [], []>} : vector<8x128xf32>, vector<128x128xf32>, vector<8x128xf32> -> vector<8x128xf32>
    %c264 = arith.constant 264 : index
    %c0_10 = arith.constant 0 : index
    %44 = vector.load %arg3[%c264, %c0_10] : memref<704x128xf32, #tpu.memory_space<vmem>>, vector<20x128xf32>
    %cst_11 = arith.constant dense<0.000000e+00> : vector<8x128xf32>
    %45 = tpu.matmul %23, %44, %cst_11 {dimension_numbers = #tpu.dot_dimension_numbers<[1], [0], [0], [1], [0, 0, 1, 1], [], []>} : vector<8x20xf32>, vector<20x128xf32>, vector<8x128xf32> -> vector<8x128xf32>
    %46 = arith.addf %43, %45 : vector<8x128xf32>
    %c288 = arith.constant 288 : index
    %c0_12 = arith.constant 0 : index
    %47 = vector.load %arg3[%c288, %c0_12] : memref<704x128xf32, #tpu.memory_space<vmem>>, vector<20x128xf32>
    %cst_13 = arith.constant dense<0.000000e+00> : vector<8x128xf32>
    %48 = tpu.matmul %41, %47, %cst_13 {dimension_numbers = #tpu.dot_dimension_numbers<[1], [0], [0], [1], [0, 0, 1, 1], [], []>} : vector<8x20xf32>, vector<20x128xf32>, vector<8x128xf32> -> vector<8x128xf32>
    %49 = arith.addf %46, %48 : vector<8x128xf32>
    %50 = vector.extract_strided_slice %49 {offsets = [0, 0], sizes = [8, 20], strides = [1, 1]} : vector<8x128xf32> to vector<8x20xf32>
    %51 = vector.extract_strided_slice %49 {offsets = [0, 20], sizes = [8, 1], strides = [1, 1]} : vector<8x128xf32> to vector<8x1xf32>
    %c0_14 = arith.constant 0 : index
    %52 = memref.load %arg1[%c0_14] : memref<1xi32, #tpu.memory_space<smem>>
    %c1_i32 = arith.constant 1 : i32
    %53 = arith.subi %52, %c1_i32 : i32
    %54 = arith.sitofp %53 : i32 to f32
    %55 = vector.broadcast %54 : f32 to vector<1x1xf32>
    %c312 = arith.constant 312 : index
    %c0_15 = arith.constant 0 : index
    %56 = vector.load %arg3[%c312, %c0_15] : memref<704x128xf32, #tpu.memory_space<vmem>>, vector<1x128xf32>
    %57 = vector.extract_strided_slice %56 {offsets = [0, 0], sizes = [1, 20], strides = [1, 1]} : vector<1x128xf32> to vector<1x20xf32>
    %58 = vector.broadcast %51 : vector<8x1xf32> to vector<8x20xf32>
    %59 = vector.broadcast %57 : vector<1x20xf32> to vector<8x20xf32>
    %60 = arith.mulf %58, %59 : vector<8x20xf32>
    %61 = arith.subf %60, %50 : vector<8x20xf32>
    %cst_16 = arith.constant 1.000000e+00 : f32
    %62 = vector.broadcast %cst_16 : f32 to vector<1x1xf32>
    %63 = arith.divf %62, %55 : vector<1x1xf32>
    %64 = vector.broadcast %63 : vector<1x1xf32> to vector<8x20xf32>
    %65 = arith.mulf %61, %64 : vector<8x20xf32>
    %c320 = arith.constant 320 : index
    %c0_17 = arith.constant 0 : index
    %66 = vector.load %arg3[%c320, %c0_17] : memref<704x128xf32, #tpu.memory_space<vmem>>, vector<1x128xf32>
    %67 = vector.extract_strided_slice %66 {offsets = [0, 0], sizes = [1, 20], strides = [1, 1]} : vector<1x128xf32> to vector<1x20xf32>
    %68 = vector.broadcast %67 : vector<1x20xf32> to vector<8x20xf32>
    %69 = arith.addf %65, %68 : vector<8x20xf32>
    %70 = math.tanh %69 : vector<8x20xf32>
    %c328 = arith.constant 328 : index
    %c0_18 = arith.constant 0 : index
    %71 = vector.load %arg3[%c328, %c0_18] : memref<704x128xf32, #tpu.memory_space<vmem>>, vector<20x128xf32>
    %cst_19 = arith.constant dense<0.000000e+00> : vector<8x128xf32>
    %72 = tpu.matmul %70, %71, %cst_19 {dimension_numbers = #tpu.dot_dimension_numbers<[1], [0], [0], [1], [0, 0, 1, 1], [], []>} : vector<8x20xf32>, vector<20x128xf32>, vector<8x128xf32> -> vector<8x128xf32>
    %c352 = arith.constant 352 : index
    %c0_20 = arith.constant 0 : index
    %73 = vector.load %arg3[%c352, %c0_20] : memref<704x128xf32, #tpu.memory_space<vmem>>, vector<1x128xf32>
    %74 = vector.broadcast %73 : vector<1x128xf32> to vector<8x128xf32>
    %75 = arith.addf %72, %74 : vector<8x128xf32>
    %c360 = arith.constant 360 : index
    %c0_21 = arith.constant 0 : index
    %76 = vector.load %arg3[%c360, %c0_21] : memref<704x128xf32, #tpu.memory_space<vmem>>, vector<128x128xf32>
    %cst_22 = arith.constant dense<0.000000e+00> : vector<8x128xf32>
    %77 = tpu.matmul %0, %76, %cst_22 {dimension_numbers = #tpu.dot_dimension_numbers<[1], [0], [0], [1], [0, 0, 1, 1], [], []>} : vector<8x128xf32>, vector<128x128xf32>, vector<8x128xf32> -> vector<8x128xf32>
    %c488 = arith.constant 488 : index
    %c0_23 = arith.constant 0 : index
    %78 = vector.load %arg3[%c488, %c0_23] : memref<704x128xf32, #tpu.memory_space<vmem>>, vector<20x128xf32>
    %cst_24 = arith.constant dense<0.000000e+00> : vector<8x128xf32>
    %79 = tpu.matmul %23, %78, %cst_24 {dimension_numbers = #tpu.dot_dimension_numbers<[1], [0], [0], [1], [0, 0, 1, 1], [], []>} : vector<8x20xf32>, vector<20x128xf32>, vector<8x128xf32> -> vector<8x128xf32>
    %80 = arith.addf %77, %79 : vector<8x128xf32>
    %c512 = arith.constant 512 : index
    %c0_25 = arith.constant 0 : index
    %81 = vector.load %arg3[%c512, %c0_25] : memref<704x128xf32, #tpu.memory_space<vmem>>, vector<20x128xf32>
    %cst_26 = arith.constant dense<0.000000e+00> : vector<8x128xf32>
    %82 = tpu.matmul %41, %81, %cst_26 {dimension_numbers = #tpu.dot_dimension_numbers<[1], [0], [0], [1], [0, 0, 1, 1], [], []>} : vector<8x20xf32>, vector<20x128xf32>, vector<8x128xf32> -> vector<8x128xf32>
    %83 = arith.addf %80, %82 : vector<8x128xf32>
    %c536 = arith.constant 536 : index
    %c0_27 = arith.constant 0 : index
    %84 = vector.load %arg3[%c536, %c0_27] : memref<704x128xf32, #tpu.memory_space<vmem>>, vector<128x128xf32>
    %cst_28 = arith.constant dense<0.000000e+00> : vector<8x128xf32>
    %85 = tpu.matmul %75, %84, %cst_28 {dimension_numbers = #tpu.dot_dimension_numbers<[1], [0], [0], [1], [0, 0, 1, 1], [], []>} : vector<8x128xf32>, vector<128x128xf32>, vector<8x128xf32> -> vector<8x128xf32>
    %86 = arith.addf %83, %85 : vector<8x128xf32>
    %c664 = arith.constant 664 : index
    %c0_29 = arith.constant 0 : index
    %87 = vector.load %arg3[%c664, %c0_29] : memref<704x128xf32, #tpu.memory_space<vmem>>, vector<1x128xf32>
    %88 = vector.broadcast %87 : vector<1x128xf32> to vector<8x128xf32>
    %89 = arith.addf %86, %88 : vector<8x128xf32>
    %90 = vector.extract_strided_slice %89 {offsets = [0, 0], sizes = [8, 20], strides = [1, 1]} : vector<8x128xf32> to vector<8x20xf32>
    %91 = math.tanh %90 : vector<8x20xf32>
    %c672 = arith.constant 672 : index
    %c0_30 = arith.constant 0 : index
    %92 = vector.load %arg3[%c672, %c0_30] : memref<704x128xf32, #tpu.memory_space<vmem>>, vector<20x128xf32>
    %cst_31 = arith.constant dense<0.000000e+00> : vector<8x128xf32>
    %93 = tpu.matmul %91, %92, %cst_31 {dimension_numbers = #tpu.dot_dimension_numbers<[1], [0], [0], [1], [0, 0, 1, 1], [], []>} : vector<8x20xf32>, vector<20x128xf32>, vector<8x128xf32> -> vector<8x128xf32>
    %c696 = arith.constant 696 : index
    %c0_32 = arith.constant 0 : index
    %94 = vector.load %arg3[%c696, %c0_32] : memref<704x128xf32, #tpu.memory_space<vmem>>, vector<1x128xf32>
    %95 = vector.broadcast %94 : vector<1x128xf32> to vector<8x128xf32>
    %96 = arith.addf %93, %95 : vector<8x128xf32>
    %c0_33 = arith.constant 0 : index
    %c0_34 = arith.constant 0 : index
    %97 = vector.load %arg4[%c0_33, %c0_34] : memref<8x128xf32, #tpu.memory_space<vmem>>, vector<8x128xf32>
    tpu.vector_store %arg4[%c0_33, %c0_34], %96 {strides = array<i32>} : memref<8x128xf32, #tpu.memory_space<vmem>>, vector<8x128xf32>,
    return
  }
  func.func @transform_0(%arg0: i32, %arg1: memref<1xi32, #tpu.memory_space<smem>>) -> (i32, i32) {
    %c0_i32 = arith.constant 0 : i32
    %c0_i32_0 = arith.constant 0 : i32
    return %arg0, %c0_i32 : i32, i32
  }
  func.func @transform_1(%arg0: i32, %arg1: memref<1xi32, #tpu.memory_space<smem>>) -> (i32, i32) {
    %c0_i32 = arith.constant 0 : i32
    %c0_i32_0 = arith.constant 0 : i32
    %c0_i32_1 = arith.constant 0 : i32
    return %c0_i32, %c0_i32_0 : i32, i32
  }
  func.func @transform_2(%arg0: i32, %arg1: memref<1xi32, #tpu.memory_space<smem>>) -> (i32, i32) {
    %c0_i32 = arith.constant 0 : i32
    %c0_i32_0 = arith.constant 0 : i32
    return %arg0, %c0_i32 : i32, i32
  }
}

</mosaic_0001>

<llo_original>
// kernel: tpu_custom_call.1
$region0: #{tpu_custom_call.1}
  #allocation0 [shape = 'u32[]', space=smem, size = 0x4, offset = 0x4, fixed_abs, tag = 'smem constant byte address 0x4 - core index']
  #allocation1 [shape = 'u32[144,128]{1,0:T(1,128)}', space=vmem, size = 0x12000, scoped, tag = 'internal scratch']
  #allocation2 [shape = 's32[1]{0}', space=sflag, size = 0x4, scoped, tag = 'scoped memory for tpu_custom_call.1']
  #allocation3 [shape = 's32[1]{0:T(128)S(6)}', space=smem, size = 0x200, scoped, tag = 'prefetched SMEM operand 0']
  %s0 = inlined_call_operand.<no memory space> [shape: s32[1], index: 0, kind: input, shape index: {}]
  %s1 = inlined_call_operand.hbm [shape: f32[8,128], index: 1, kind: input, shape index: {}]
  %s2 = inlined_call_operand.hbm [shape: f32[704,128], index: 2, kind: input, shape index: {}]
  %s3 = inlined_call_operand.hbm [shape: f32[8,128], index: 3, kind: output, shape index: {}]
  %s4 = sld [smem:[#allocation0]]
  $region26: #{tpu_custom_call.1} parent=0
    _
  %s6 = ssub.s32 1, %s4
  %s7 = scalar_select 0, %s6, %s4
  %8 = sst [smem:[#allocation3]] %s0
  $region1: #{tpu_custom_call.1} parent=0
    #allocation4 [shape = 'u8[4096]{0}', space=vmem, size = 0x1000, scoped, tag = 'input window, operand 1, single buffered']
    #allocation5 [shape = 's32[1]{0}', space=sflag, size = 0x4, scoped, tag = 'scoped memory for tpu_custom_call.1']
    #allocation6 [shape = 's32[1]{0}', space=sflag, size = 0x4, scoped, tag = 'scoped memory for tpu_custom_call.1']
    #allocation7 [shape = 'u8[360448]{0}', space=vmem, size = 0x58000, scoped, tag = 'input window, operand 2, single buffered']
    #allocation8 [shape = 's32[1]{0}', space=sflag, size = 0x4, scoped, tag = 'scoped memory for tpu_custom_call.1']
    #allocation9 [shape = 'u8[4096]{0}', space=vmem, size = 0x1000, scoped, tag = 'output window, operand 0, single buffered']
    %9 = vsyncpa [#allocation5], 0
    %10 = vsyncpa [#allocation8], 0
    %11 = vsyncpa [#allocation6], 0
    // Predicated region
    $region2: #{tpu_custom_call.1} parent=1 // pred_check
      _
    $region3: #{tpu_custom_call.1} parent=1 // pred_check_branch
      %13 = sbr.rel (0) target = $region5
    $region4: #{tpu_custom_call.1} parent=1 // pred_region
      %s15 = ssub.s32 128, 128
      %16 = vsyncadd [#allocation5], %s15
      %s18 = sshll.u32 [#allocation4], 4
      %s19 = int_to_ptr.vmem [resolvable:$true] %s18
      %21 = dma.hbm_to_vmem [thread:$0]  %s1, 128, %s19, [#allocation5]
    $region5: #{tpu_custom_call.1} parent=1 // pred_fallthru
      _
    // Predicated region
    $region6: #{tpu_custom_call.1} parent=1 // pred_check
      _
    $region7: #{tpu_custom_call.1} parent=1 // pred_check_branch
      %23 = sbr.rel (0) target = $region9
    $region8: #{tpu_custom_call.1} parent=1 // pred_region
      %s25 = ssub.s32 11264, 11264
      %26 = vsyncadd [#allocation8], %s25
      %s27 = sshll.u32 [#allocation7], 4
      %s28 = int_to_ptr.vmem [resolvable:$true] %s27
      %33 = dma.hbm_to_vmem [thread:$0]  %s2, 11264, %s28, [#allocation8], 128, 128, 8
    $region9: #{tpu_custom_call.1} parent=1 // pred_fallthru
      _
    // Predicated region
    $region10: #{tpu_custom_call.1} parent=1 // pred_check
      _
    $region11: #{tpu_custom_call.1} parent=1 // pred_check_branch
      %35 = sbr.rel (0) target = $region13
    $region12: #{tpu_custom_call.1} parent=1 // pred_region
      %36 = dma.done [#allocation5], 128
    $region13: #{tpu_custom_call.1} parent=1 // pred_fallthru
      _
    // Predicated region
    $region14: #{tpu_custom_call.1} parent=1 // pred_check
      _
    $region15: #{tpu_custom_call.1} parent=1 // pred_check_branch
      %38 = sbr.rel (0) target = $region17
    $region16: #{tpu_custom_call.1} parent=1 // pred_region
      %39 = dma.done [#allocation8], 11264
    $region17: #{tpu_custom_call.1} parent=1 // pred_fallthru
      _
    %v40 = vld [vmem:[#allocation4] sm:$0xff]
    %v41 = vld [vmem:[#allocation7] sm:$0xff]
    %v42 = vld [vmem:[#allocation7 + $0x8] sm:$0xff]
    %v43 = vld [vmem:[#allocation7 + $0x10] sm:$0xff]
    %v44 = vld [vmem:[#allocation7 + $0x18] sm:$0xff]
    %v45 = vld [vmem:[#allocation7 + $0x20] sm:$0xff]
    %v46 = vld [vmem:[#allocation7 + $0x28] sm:$0xff]
    %v47 = vld [vmem:[#allocation7 + $0x30] sm:$0xff]
    %v48 = vld [vmem:[#allocation7 + $0x38] sm:$0xff]
    %v49 = vld [vmem:[#allocation7 + $0x40] sm:$0xff]
    %v50 = vld [vmem:[#allocation7 + $0x48] sm:$0xff]
    %v51 = vld [vmem:[#allocation7 + $0x50] sm:$0xff]
    %v52 = vld [vmem:[#allocation7 + $0x58] sm:$0xff]
    %v53 = vld [vmem:[#allocation7 + $0x60] sm:$0xff]
    %v54 = vld [vmem:[#allocation7 + $0x68] sm:$0xff]
    %v55 = vld [vmem:[#allocation7 + $0x70] sm:$0xff]
    %v56 = vld [vmem:[#allocation7 + $0x78] sm:$0xff]
    %v57 = vld [vmem:[#allocation7 + $0x80] sm:$0x1]
    %v58 = vlaneseq
    %v59 = vshrl.u32 %v58, 7
    %v60 = vsub.s32 0, %v59
    %v61 = vrot.slane %v57, %v60
    %62 = vmatprep.subr.mxu0 0.0
    %63 = vmatpush1.msra.mxu0 %v41
    %64 = vmatprep.subr.mxu0 0.0
    %65 = vmatpush1.msra.mxu0 %v42
    %66 = vmatprep.subr.mxu0 0.0
    %67 = vmatpush1.msra.mxu0 %v43
    %68 = vmatprep.subr.mxu0 0.0
    %69 = vmatpush1.msra.mxu0 %v44
    %70 = vmatprep.subr.mxu0 0.0
    %71 = vmatpush1.msra.mxu0 %v45
    %72 = vmatprep.subr.mxu0 0.0
    %73 = vmatpush1.msra.mxu0 %v46
    %74 = vmatprep.subr.mxu0 0.0
    %75 = vmatpush1.msra.mxu0 %v47
    %76 = vmatprep.subr.mxu0 0.0
    %77 = vmatpush1.msra.mxu0 %v48
    %78 = vmatprep.subr.mxu0 0.0
    %79 = vmatpush1.msra.mxu0 %v49
    %80 = vmatprep.subr.mxu0 0.0
    %81 = vmatpush1.msra.mxu0 %v50
    %82 = vmatprep.subr.mxu0 0.0
    %83 = vmatpush1.msra.mxu0 %v51
    %84 = vmatprep.subr.mxu0 0.0
    %85 = vmatpush1.msra.mxu0 %v52
    %86 = vmatprep.subr.mxu0 0.0
    %87 = vmatpush1.msra.mxu0 %v53
    %88 = vmatprep.subr.mxu0 0.0
    %89 = vmatpush1.msra.mxu0 %v54
    %90 = vmatprep.subr.mxu0 0.0
    %91 = vmatpush1.msra.mxu0 %v55
    %92 = vmatprep.subr.mxu0 0.0
    %93 = vmatpush1.msra.mxu0 %v56
    %94 = vmatprep.subr.mxu0 0.0
    %95 = vmatpush1.msra.mxu0 0.0
    %96 = vmatprep.subr.mxu0 0.0
    %97 = vmatpush1.msra.mxu0 0.0
    %98 = vmatprep.subr.mxu0 0.0
    %99 = vmatpush1.msra.mxu0 0.0
    %100 = vmatprep.subr.mxu0 0.0
    %101 = vmatpush1.msra.mxu0 0.0
    %102 = vmatprep.subr.mxu0 0.0
    %103 = vmatpush1.msra.mxu0 0.0
    %104 = vmatprep.subr.mxu0 0.0
    %105 = vmatpush1.msra.mxu0 0.0
    %106 = vmatprep.subr.mxu0 0.0
    %107 = vmatpush1.msra.mxu0 0.0
    %108 = vmatprep.subr.mxu0 0.0
    %109 = vmatpush1.msra.mxu0 0.0
    %110 = vmatprep.subr.mxu0 0.0
    %111 = vmatpush1.msra.mxu0 0.0
    %112 = vmatprep.subr.mxu0 0.0
    %113 = vmatpush1.msra.mxu0 0.0
    %114 = vmatprep.subr.mxu0 0.0
    %115 = vmatpush1.msra.mxu0 0.0
    %116 = vmatprep.subr.mxu0 0.0
    %117 = vmatpush1.msra.mxu0 0.0
    %118 = vmatprep.subr.mxu0 0.0
    %119 = vmatpush1.msra.mxu0 0.0
    %120 = vmatprep.subr.mxu0 0.0
    %121 = vmatpush1.msra.mxu0 0.0
    %122 = vmatprep.subr.mxu0 0.0
    %123 = vmatpush1.msra.mxu0 0.0
    %124 = vmatprep.subr.mxu0 0.0
    %125 = vmatpush1.msra.mxu0 0.0
    %126 = vmatprep.mubr.f32.mxu0 0.0
    %127 = vmatmul.mubr.f32.gmra.mrb[0].mxu0 %v40
    %v128 = vpop.f32.mrb[0].mxu0
    %v129 = vadd.f32 %v61, %v128
    %v130 = vpop.f32.mrb[0].mxu0
    %131 = vdwg.mxu0
    %v132 = vxor.u32 %v129, 2147483648
    %v133 = vmul.f32 %v132, 1.442695
    %v134 = vpow.pop %v133
    %v135 = vadd.f32 %v134, 1.0
    %v136 = vrcp.pop %v135
    %v137 = vmul.f32 1.0, %v136
    %v138 = vtanh.pop %v129
    %140 = vrot.lane.b32.xlu0 %v138, 108
    %v141 = vpop.permute.xlu0 %140
    %v143 = vmul.f32 %v137, %v141
    %v144 = vtanh.pop %v143
    %146 = vrot.lane.b32.xlu0 %v144, 40
    %v147 = vpop.permute.xlu0 %146
    %v149 = vmul.f32 %v137, %v147
    %v150 = vld [vmem:[#allocation7 + $0x88] sm:$0xff]
    %v151 = vld [vmem:[#allocation7 + $0x90] sm:$0xff]
    %v152 = vld [vmem:[#allocation7 + $0x98] sm:$0xff]
    %v153 = vld [vmem:[#allocation7 + $0xa0] sm:$0xff]
    %v154 = vld [vmem:[#allocation7 + $0xa8] sm:$0xff]
    %v155 = vld [vmem:[#allocation7 + $0xb0] sm:$0xff]
    %v156 = vld [vmem:[#allocation7 + $0xb8] sm:$0xff]
    %v157 = vld [vmem:[#allocation7 + $0xc0] sm:$0xff]
    %v158 = vld [vmem:[#allocation7 + $0xc8] sm:$0xff]
    %v159 = vld [vmem:[#allocation7 + $0xd0] sm:$0xff]
    %v160 = vld [vmem:[#allocation7 + $0xd8] sm:$0xff]
    %v161 = vld [vmem:[#allocation7 + $0xe0] sm:$0xff]
    %v162 = vld [vmem:[#allocation7 + $0xe8] sm:$0xff]
    %v163 = vld [vmem:[#allocation7 + $0xf0] sm:$0xff]
    %v164 = vld [vmem:[#allocation7 + $0xf8] sm:$0xff]
    %v165 = vld [vmem:[#allocation7 + $0x100] sm:$0xff]
    %v166 = vld [vmem:[#allocation7 + $0x108] sm:$0xff]
    %v167 = vld [vmem:[#allocation7 + $0x110] sm:$0xff]
    %v168 = vld [vmem:[#allocation7 + $0x118] sm:$0xf]
    %170 = vrot.lane.b32.xlu0 %v149, 88
    %v171 = vpop.permute.xlu0 %170
    %vm172 = vcmask 162816
    %v173 = vsel %vm172, %v171, 0
    %vm175 = vcmask 1043456
    %v177 = vsel %vm175, %v168, 0
    %179 = vmatprep.subr.mxu0 0.0
    %180 = vmatpush1.msra.mxu0 %v166
    %181 = vmatprep.subr.mxu0 0.0
    %182 = vmatpush1.msra.mxu0 %v167
    %183 = vmatprep.subr.mxu0 0.0
    %184 = vmatpush1.msra.mxu0 %v177
    %185 = vmatprep.subr.mxu0 0.0
    %186 = vmatpush1.msra.mxu0 0.0
    %187 = vmatprep.subr.mxu0 0.0
    %188 = vmatpush1.msra.mxu0 0.0
    %189 = vmatprep.subr.mxu0 0.0
    %190 = vmatpush1.msra.mxu0 0.0
    %191 = vmatprep.subr.mxu0 0.0
    %192 = vmatpush1.msra.mxu0 0.0
    %193 = vmatprep.subr.mxu0 0.0
    %194 = vmatpush1.msra.mxu0 0.0
    %195 = vmatprep.subr.mxu0 0.0
    %196 = vmatpush1.msra.mxu0 0.0
    %197 = vmatprep.subr.mxu0 0.0
    %198 = vmatpush1.msra.mxu0 0.0
    %199 = vmatprep.subr.mxu0 0.0
    %200 = vmatpush1.msra.mxu0 0.0
    %201 = vmatprep.subr.mxu0 0.0
    %202 = vmatpush1.msra.mxu0 0.0
    %203 = vmatprep.subr.mxu0 0.0
    %204 = vmatpush1.msra.mxu0 0.0
    %205 = vmatprep.subr.mxu0 0.0
    %206 = vmatpush1.msra.mxu0 0.0
    %207 = vmatprep.subr.mxu0 0.0
    %208 = vmatpush1.msra.mxu0 0.0
    %209 = vmatprep.subr.mxu0 0.0
    %210 = vmatpush1.msra.mxu0 0.0
    %211 = vmatprep.subr.mxu0 0.0
    %212 = vmatpush1.msra.mxu0 0.0
    %213 = vmatprep.subr.mxu0 0.0
    %214 = vmatpush1.msra.mxu0 0.0
    %215 = vmatprep.subr.mxu0 0.0
    %216 = vmatpush1.msra.mxu0 0.0
    %217 = vmatprep.subr.mxu0 0.0
    %218 = vmatpush1.msra.mxu0 0.0
    %219 = vmatprep.subr.mxu0 0.0
    %220 = vmatpush1.msra.mxu0 0.0
    %221 = vmatprep.subr.mxu0 0.0
    %222 = vmatpush1.msra.mxu0 0.0
    %223 = vmatprep.subr.mxu0 0.0
    %224 = vmatpush1.msra.mxu0 0.0
    %225 = vmatprep.subr.mxu0 0.0
    %226 = vmatpush1.msra.mxu0 0.0
    %227 = vmatprep.subr.mxu0 0.0
    %228 = vmatpush1.msra.mxu0 0.0
    %229 = vmatprep.subr.mxu0 0.0
    %230 = vmatpush1.msra.mxu0 0.0
    %231 = vmatprep.subr.mxu0 0.0
    %232 = vmatpush1.msra.mxu0 0.0
    %233 = vmatprep.subr.mxu0 0.0
    %234 = vmatpush1.msra.mxu0 0.0
    %235 = vmatprep.subr.mxu0 0.0
    %236 = vmatpush1.msra.mxu0 0.0
    %237 = vmatprep.subr.mxu0 0.0
    %238 = vmatpush1.msra.mxu0 0.0
    %239 = vmatprep.subr.mxu0 0.0
    %240 = vmatpush1.msra.mxu0 0.0
    %241 = vmatprep.subr.mxu0 0.0
    %242 = vmatpush1.msra.mxu0 0.0
    %243 = vmatprep.mubr.f32.mxu0 0.0
    %244 = vmatmul.mubr.f32.gmra.mrb[0].mxu0 %v173
    %v245 = vpop.f32.mrb[0].mxu0
    %v246 = vadd.f32 0.0, %v245
    %v247 = vpop.f32.mrb[0].mxu0
    %248 = vdwg.mxu0
    %249 = vmatprep.subr.mxu0 0.0
    %250 = vmatpush1.msra.mxu0 %v150
    %251 = vmatprep.subr.mxu0 0.0
    %252 = vmatpush1.msra.mxu0 %v151
    %253 = vmatprep.subr.mxu0 0.0
    %254 = vmatpush1.msra.mxu0 %v152
    %255 = vmatprep.subr.mxu0 0.0
    %256 = vmatpush1.msra.mxu0 %v153
    %257 = vmatprep.subr.mxu0 0.0
    %258 = vmatpush1.msra.mxu0 %v154
    %259 = vmatprep.subr.mxu0 0.0
    %260 = vmatpush1.msra.mxu0 %v155
    %261 = vmatprep.subr.mxu0 0.0
    %262 = vmatpush1.msra.mxu0 %v156
    %263 = vmatprep.subr.mxu0 0.0
    %264 = vmatpush1.msra.mxu0 %v157
    %265 = vmatprep.subr.mxu0 0.0
    %266 = vmatpush1.msra.mxu0 %v158
    %267 = vmatprep.subr.mxu0 0.0
    %268 = vmatpush1.msra.mxu0 %v159
    %269 = vmatprep.subr.mxu0 0.0
    %270 = vmatpush1.msra.mxu0 %v160
    %271 = vmatprep.subr.mxu0 0.0
    %272 = vmatpush1.msra.mxu0 %v161
    %273 = vmatprep.subr.mxu0 0.0
    %274 = vmatpush1.msra.mxu0 %v162
    %275 = vmatprep.subr.mxu0 0.0
    %276 = vmatpush1.msra.mxu0 %v163
    %277 = vmatprep.subr.mxu0 0.0
    %278 = vmatpush1.msra.mxu0 %v164
    %279 = vmatprep.subr.mxu0 0.0
    %280 = vmatpush1.msra.mxu0 %v165
    %281 = vmatprep.subr.mxu0 0.0
    %282 = vmatpush1.msra.mxu0 0.0
    %283 = vmatprep.subr.mxu0 0.0
    %284 = vmatpush1.msra.mxu0 0.0
    %285 = vmatprep.subr.mxu0 0.0
    %286 = vmatpush1.msra.mxu0 0.0
    %287 = vmatprep.subr.mxu0 0.0
    %288 = vmatpush1.msra.mxu0 0.0
    %289 = vmatprep.subr.mxu0 0.0
    %290 = vmatpush1.msra.mxu0 0.0
    %291 = vmatprep.subr.mxu0 0.0
    %292 = vmatpush1.msra.mxu0 0.0
    %293 = vmatprep.subr.mxu0 0.0
    %294 = vmatpush1.msra.mxu0 0.0
    %295 = vmatprep.subr.mxu0 0.0
    %296 = vmatpush1.msra.mxu0 0.0
    %297 = vmatprep.subr.mxu0 0.0
    %298 = vmatpush1.msra.mxu0 0.0
    %299 = vmatprep.subr.mxu0 0.0
    %300 = vmatpush1.msra.mxu0 0.0
    %301 = vmatprep.subr.mxu0 0.0
    %302 = vmatpush1.msra.mxu0 0.0
    %303 = vmatprep.subr.mxu0 0.0
    %304 = vmatpush1.msra.mxu0 0.0
    %305 = vmatprep.subr.mxu0 0.0
    %306 = vmatpush1.msra.mxu0 0.0
    %307 = vmatprep.subr.mxu0 0.0
    %308 = vmatpush1.msra.mxu0 0.0
    %309 = vmatprep.subr.mxu0 0.0
    %310 = vmatpush1.msra.mxu0 0.0
    %311 = vmatprep.subr.mxu0 0.0
    %312 = vmatpush1.msra.mxu0 0.0
    %313 = vmatprep.mubr.f32.mxu0 0.0
    %314 = vmatmul.mubr.f32.gmra.mrb[0].mxu0 %v40
    %v315 = vpop.f32.mrb[0].mxu0
    %v316 = vadd.f32 %v246, %v315
    %v317 = vpop.f32.mrb[0].mxu0
    %318 = vdwg.mxu0
    %v319 = vld [vmem:[#allocation7 + $0x120] sm:$0xff]
    %v320 = vld [vmem:[#allocation7 + $0x128] sm:$0xff]
    %v321 = vld [vmem:[#allocation7 + $0x130] sm:$0xf]
    %322 = vrot.lane.b32.xlu0 %v149, 28
    %v323 = vpop.permute.xlu0 %322
    %v324 = vsel %vm172, %v323, 0
    %v327 = vsel %vm175, %v321, 0
    %329 = vmatprep.subr.mxu0 0.0
    %330 = vmatpush1.msra.mxu0 %v319
    %331 = vmatprep.subr.mxu0 0.0
    %332 = vmatpush1.msra.mxu0 %v320
    %333 = vmatprep.subr.mxu0 0.0
    %334 = vmatpush1.msra.mxu0 %v327
    %335 = vmatprep.subr.mxu0 0.0
    %336 = vmatpush1.msra.mxu0 0.0
    %337 = vmatprep.subr.mxu0 0.0
    %338 = vmatpush1.msra.mxu0 0.0
    %339 = vmatprep.subr.mxu0 0.0
    %340 = vmatpush1.msra.mxu0 0.0
    %341 = vmatprep.subr.mxu0 0.0
    %342 = vmatpush1.msra.mxu0 0.0
    %343 = vmatprep.subr.mxu0 0.0
    %344 = vmatpush1.msra.mxu0 0.0
    %345 = vmatprep.subr.mxu0 0.0
    %346 = vmatpush1.msra.mxu0 0.0
    %347 = vmatprep.subr.mxu0 0.0
    %348 = vmatpush1.msra.mxu0 0.0
    %349 = vmatprep.subr.mxu0 0.0
    %350 = vmatpush1.msra.mxu0 0.0
    %351 = vmatprep.subr.mxu0 0.0
    %352 = vmatpush1.msra.mxu0 0.0
    %353 = vmatprep.subr.mxu0 0.0
    %354 = vmatpush1.msra.mxu0 0.0
    %355 = vmatprep.subr.mxu0 0.0
    %356 = vmatpush1.msra.mxu0 0.0
    %357 = vmatprep.subr.mxu0 0.0
    %358 = vmatpush1.msra.mxu0 0.0
    %359 = vmatprep.subr.mxu0 0.0
    %360 = vmatpush1.msra.mxu0 0.0
    %361 = vmatprep.subr.mxu0 0.0
    %362 = vmatpush1.msra.mxu0 0.0
    %363 = vmatprep.subr.mxu0 0.0
    %364 = vmatpush1.msra.mxu0 0.0
    %365 = vmatprep.subr.mxu0 0.0
    %366 = vmatpush1.msra.mxu0 0.0
    %367 = vmatprep.subr.mxu0 0.0
    %368 = vmatpush1.msra.mxu0 0.0
    %369 = vmatprep.subr.mxu0 0.0
    %370 = vmatpush1.msra.mxu0 0.0
    %371 = vmatprep.subr.mxu0 0.0
    %372 = vmatpush1.msra.mxu0 0.0
    %373 = vmatprep.subr.mxu0 0.0
    %374 = vmatpush1.msra.mxu0 0.0
    %375 = vmatprep.subr.mxu0 0.0
    %376 = vmatpush1.msra.mxu0 0.0
    %377 = vmatprep.subr.mxu0 0.0
    %378 = vmatpush1.msra.mxu0 0.0
    %379 = vmatprep.subr.mxu0 0.0
    %380 = vmatpush1.msra.mxu0 0.0
    %381 = vmatprep.subr.mxu0 0.0
    %382 = vmatpush1.msra.mxu0 0.0
    %383 = vmatprep.subr.mxu0 0.0
    %384 = vmatpush1.msra.mxu0 0.0
    %385 = vmatprep.subr.mxu0 0.0
    %386 = vmatpush1.msra.mxu0 0.0
    %387 = vmatprep.subr.mxu0 0.0
    %388 = vmatpush1.msra.mxu0 0.0
    %389 = vmatprep.subr.mxu0 0.0
    %390 = vmatpush1.msra.mxu0 0.0
    %391 = vmatprep.subr.mxu0 0.0
    %392 = vmatpush1.msra.mxu0 0.0
    %393 = vmatprep.mubr.f32.mxu0 0.0
    %394 = vmatmul.mubr.f32.gmra.mrb[0].mxu0 %v324
    %v395 = vpop.f32.mrb[0].mxu0
    %v396 = vadd.f32 0.0, %v395
    %v397 = vpop.f32.mrb[0].mxu0
    %398 = vdwg.mxu0
    %v399 = vadd.f32 %v316, %v396
    %s400 = sld [smem:[#allocation3]]
    %s401 = ssub.s32 %s400, 1
    %s402 = scvt.s32.f32 %s401
    %v403 = vstv %s402
    %v404 = vld [vmem:[#allocation7 + $0x138] sm:$0x1]
    %406 = vset.pattern.permute.xlu0 20
    %407 = vperm.xlu0 %406, %v399
    %v408 = vpop.permute.xlu0 %407
    %v410 = vlaneseq
    %v411 = vshrl.u32 %v410, 7
    %v412 = vsub.s32 0, %v411
    %v413 = vrot.slane %v404, %v412
    %v414 = vmul.f32 %v408, %v413
    %v415 = vsub.f32 %v414, %v399
    %v416 = vrcp.pop %v403
    %v417 = vmul.f32 1.0, %v416
    %v418 = vmul.f32 %v415, %v417
    %v419 = vld [vmem:[#allocation7 + $0x140] sm:$0x1]
    %v420 = vlaneseq
    %v421 = vshrl.u32 %v420, 7
    %v422 = vsub.s32 0, %v421
    %v423 = vrot.slane %v419, %v422
    %v424 = vadd.f32 %v418, %v423
    %v425 = vtanh.pop %v424
    %v426 = vld [vmem:[#allocation7 + $0x148] sm:$0xff]
    %v427 = vld [vmem:[#allocation7 + $0x150] sm:$0xff]
    %v428 = vld [vmem:[#allocation7 + $0x158] sm:$0xf]
    %v429 = vld [vmem:[#allocation7 + $0x160] sm:$0x1]
    %v430 = vlaneseq
    %v431 = vshrl.u32 %v430, 7
    %v432 = vsub.s32 0, %v431
    %v433 = vrot.slane %v429, %v432
    %v435 = vsel %vm172, %v425, 0
    %v438 = vsel %vm175, %v428, 0
    %440 = vmatprep.subr.mxu0 0.0
    %441 = vmatpush1.msra.mxu0 %v426
    %442 = vmatprep.subr.mxu0 0.0
    %443 = vmatpush1.msra.mxu0 %v427
    %444 = vmatprep.subr.mxu0 0.0
    %445 = vmatpush1.msra.mxu0 %v438
    %446 = vmatprep.subr.mxu0 0.0
    %447 = vmatpush1.msra.mxu0 0.0
    %448 = vmatprep.subr.mxu0 0.0
    %449 = vmatpush1.msra.mxu0 0.0
    %450 = vmatprep.subr.mxu0 0.0
    %451 = vmatpush1.msra.mxu0 0.0
    %452 = vmatprep.subr.mxu0 0.0
    %453 = vmatpush1.msra.mxu0 0.0
    %454 = vmatprep.subr.mxu0 0.0
    %455 = vmatpush1.msra.mxu0 0.0
    %456 = vmatprep.subr.mxu0 0.0
    %457 = vmatpush1.msra.mxu0 0.0
    %458 = vmatprep.subr.mxu0 0.0
    %459 = vmatpush1.msra.mxu0 0.0
    %460 = vmatprep.subr.mxu0 0.0
    %461 = vmatpush1.msra.mxu0 0.0
    %462 = vmatprep.subr.mxu0 0.0
    %463 = vmatpush1.msra.mxu0 0.0
    %464 = vmatprep.subr.mxu0 0.0
    %465 = vmatpush1.msra.mxu0 0.0
    %466 = vmatprep.subr.mxu0 0.0
    %467 = vmatpush1.msra.mxu0 0.0
    %468 = vmatprep.subr.mxu0 0.0
    %469 = vmatpush1.msra.mxu0 0.0
    %470 = vmatprep.subr.mxu0 0.0
    %471 = vmatpush1.msra.mxu0 0.0
    %472 = vmatprep.subr.mxu0 0.0
    %473 = vmatpush1.msra.mxu0 0.0
    %474 = vmatprep.subr.mxu0 0.0
    %475 = vmatpush1.msra.mxu0 0.0
    %476 = vmatprep.subr.mxu0 0.0
    %477 = vmatpush1.msra.mxu0 0.0
    %478 = vmatprep.subr.mxu0 0.0
    %479 = vmatpush1.msra.mxu0 0.0
    %480 = vmatprep.subr.mxu0 0.0
    %481 = vmatpush1.msra.mxu0 0.0
    %482 = vmatprep.subr.mxu0 0.0
    %483 = vmatpush1.msra.mxu0 0.0
    %484 = vmatprep.subr.mxu0 0.0
    %485 = vmatpush1.msra.mxu0 0.0
    %486 = vmatprep.subr.mxu0 0.0
    %487 = vmatpush1.msra.mxu0 0.0
    %488 = vmatprep.subr.mxu0 0.0
    %489 = vmatpush1.msra.mxu0 0.0
    %490 = vmatprep.subr.mxu0 0.0
    %491 = vmatpush1.msra.mxu0 0.0
    %492 = vmatprep.subr.mxu0 0.0
    %493 = vmatpush1.msra.mxu0 0.0
    %494 = vmatprep.subr.mxu0 0.0
    %495 = vmatpush1.msra.mxu0 0.0
    %496 = vmatprep.subr.mxu0 0.0
    %497 = vmatpush1.msra.mxu0 0.0
    %498 = vmatprep.subr.mxu0 0.0
    %499 = vmatpush1.msra.mxu0 0.0
    %500 = vmatprep.subr.mxu0 0.0
    %501 = vmatpush1.msra.mxu0 0.0
    %502 = vmatprep.subr.mxu0 0.0
    %503 = vmatpush1.msra.mxu0 0.0
    %504 = vmatprep.mubr.f32.mxu0 0.0
    %505 = vmatmul.mubr.f32.gmra.mrb[0].mxu0 %v435
    %v506 = vpop.f32.mrb[0].mxu0
    %v507 = vadd.f32 %v433, %v506
    %v508 = vpop.f32.mrb[0].mxu0
    %509 = vdwg.mxu0
    %v510 = vld [vmem:[#allocation7 + $0x168] sm:$0xff]
    %v511 = vld [vmem:[#allocation7 + $0x170] sm:$0xff]
    %v512 = vld [vmem:[#allocation7 + $0x178] sm:$0xff]
    %v513 = vld [vmem:[#allocation7 + $0x180] sm:$0xff]
    %v514 = vld [vmem:[#allocation7 + $0x188] sm:$0xff]
    %v515 = vld [vmem:[#allocation7 + $0x190] sm:$0xff]
    %v516 = vld [vmem:[#allocation7 + $0x198] sm:$0xff]
    %v517 = vld [vmem:[#allocation7 + $0x1a0] sm:$0xff]
    %v518 = vld [vmem:[#allocation7 + $0x1a8] sm:$0xff]
    %v519 = vld [vmem:[#allocation7 + $0x1b0] sm:$0xff]
    %v520 = vld [vmem:[#allocation7 + $0x1b8] sm:$0xff]
    %v521 = vld [vmem:[#allocation7 + $0x1c0] sm:$0xff]
    %v522 = vld [vmem:[#allocation7 + $0x1c8] sm:$0xff]
    %v523 = vld [vmem:[#allocation7 + $0x1d0] sm:$0xff]
    %v524 = vld [vmem:[#allocation7 + $0x1d8] sm:$0xff]
    %v525 = vld [vmem:[#allocation7 + $0x1e0] sm:$0xff]
    %v526 = vld [vmem:[#allocation7 + $0x1e8] sm:$0xff]
    %v527 = vld [vmem:[#allocation7 + $0x1f0] sm:$0xff]
    %v528 = vld [vmem:[#allocation7 + $0x1f8] sm:$0xf]
    %v530 = vsel %vm175, %v528, 0
    %532 = vmatprep.subr.mxu0 0.0
    %533 = vmatpush1.msra.mxu0 %v526
    %534 = vmatprep.subr.mxu0 0.0
    %535 = vmatpush1.msra.mxu0 %v527
    %536 = vmatprep.subr.mxu0 0.0
    %537 = vmatpush1.msra.mxu0 %v530
    %538 = vmatprep.subr.mxu0 0.0
    %539 = vmatpush1.msra.mxu0 0.0
    %540 = vmatprep.subr.mxu0 0.0
    %541 = vmatpush1.msra.mxu0 0.0
    %542 = vmatprep.subr.mxu0 0.0
    %543 = vmatpush1.msra.mxu0 0.0
    %544 = vmatprep.subr.mxu0 0.0
    %545 = vmatpush1.msra.mxu0 0.0
    %546 = vmatprep.subr.mxu0 0.0
    %547 = vmatpush1.msra.mxu0 0.0
    %548 = vmatprep.subr.mxu0 0.0
    %549 = vmatpush1.msra.mxu0 0.0
    %550 = vmatprep.subr.mxu0 0.0
    %551 = vmatpush1.msra.mxu0 0.0
    %552 = vmatprep.subr.mxu0 0.0
    %553 = vmatpush1.msra.mxu0 0.0
    %554 = vmatprep.subr.mxu0 0.0
    %555 = vmatpush1.msra.mxu0 0.0
    %556 = vmatprep.subr.mxu0 0.0
    %557 = vmatpush1.msra.mxu0 0.0
    %558 = vmatprep.subr.mxu0 0.0
    %559 = vmatpush1.msra.mxu0 0.0
    %560 = vmatprep.subr.mxu0 0.0
    %561 = vmatpush1.msra.mxu0 0.0
    %562 = vmatprep.subr.mxu0 0.0
    %563 = vmatpush1.msra.mxu0 0.0
    %564 = vmatprep.subr.mxu0 0.0
    %565 = vmatpush1.msra.mxu0 0.0
    %566 = vmatprep.subr.mxu0 0.0
    %567 = vmatpush1.msra.mxu0 0.0
    %568 = vmatprep.subr.mxu0 0.0
    %569 = vmatpush1.msra.mxu0 0.0
    %570 = vmatprep.subr.mxu0 0.0
    %571 = vmatpush1.msra.mxu0 0.0
    %572 = vmatprep.subr.mxu0 0.0
    %573 = vmatpush1.msra.mxu0 0.0
    %574 = vmatprep.subr.mxu0 0.0
    %575 = vmatpush1.msra.mxu0 0.0
    %576 = vmatprep.subr.mxu0 0.0
    %577 = vmatpush1.msra.mxu0 0.0
    %578 = vmatprep.subr.mxu0 0.0
    %579 = vmatpush1.msra.mxu0 0.0
    %580 = vmatprep.subr.mxu0 0.0
    %581 = vmatpush1.msra.mxu0 0.0
    %582 = vmatprep.subr.mxu0 0.0
    %583 = vmatpush1.msra.mxu0 0.0
    %584 = vmatprep.subr.mxu0 0.0
    %585 = vmatpush1.msra.mxu0 0.0
    %586 = vmatprep.subr.mxu0 0.0
    %587 = vmatpush1.msra.mxu0 0.0
    %588 = vmatprep.subr.mxu0 0.0
    %589 = vmatpush1.msra.mxu0 0.0
    %590 = vmatprep.subr.mxu0 0.0
    %591 = vmatpush1.msra.mxu0 0.0
    %592 = vmatprep.subr.mxu0 0.0
    %593 = vmatpush1.msra.mxu0 0.0
    %594 = vmatprep.subr.mxu0 0.0
    %595 = vmatpush1.msra.mxu0 0.0
    %596 = vmatprep.mubr.f32.mxu0 0.0
    %597 = vmatmul.mubr.f32.gmra.mrb[0].mxu0 %v173
    %v598 = vpop.f32.mrb[0].mxu0
    %v599 = vadd.f32 0.0, %v598
    %v600 = vpop.f32.mrb[0].mxu0
    %601 = vdwg.mxu0
    %602 = vmatprep.subr.mxu0 0.0
    %603 = vmatpush1.msra.mxu0 %v510
    %604 = vmatprep.subr.mxu0 0.0
    %605 = vmatpush1.msra.mxu0 %v511
    %606 = vmatprep.subr.mxu0 0.0
    %607 = vmatpush1.msra.mxu0 %v512
    %608 = vmatprep.subr.mxu0 0.0
    %609 = vmatpush1.msra.mxu0 %v513
    %610 = vmatprep.subr.mxu0 0.0
    %611 = vmatpush1.msra.mxu0 %v514
    %612 = vmatprep.subr.mxu0 0.0
    %613 = vmatpush1.msra.mxu0 %v515
    %614 = vmatprep.subr.mxu0 0.0
    %615 = vmatpush1.msra.mxu0 %v516
    %616 = vmatprep.subr.mxu0 0.0
    %617 = vmatpush1.msra.mxu0 %v517
    %618 = vmatprep.subr.mxu0 0.0
    %619 = vmatpush1.msra.mxu0 %v518
    %620 = vmatprep.subr.mxu0 0.0
    %621 = vmatpush1.msra.mxu0 %v519
    %622 = vmatprep.subr.mxu0 0.0
    %623 = vmatpush1.msra.mxu0 %v520
    %624 = vmatprep.subr.mxu0 0.0
    %625 = vmatpush1.msra.mxu0 %v521
    %626 = vmatprep.subr.mxu0 0.0
    %627 = vmatpush1.msra.mxu0 %v522
    %628 = vmatprep.subr.mxu0 0.0
    %629 = vmatpush1.msra.mxu0 %v523
    %630 = vmatprep.subr.mxu0 0.0
    %631 = vmatpush1.msra.mxu0 %v524
    %632 = vmatprep.subr.mxu0 0.0
    %633 = vmatpush1.msra.mxu0 %v525
    %634 = vmatprep.subr.mxu0 0.0
    %635 = vmatpush1.msra.mxu0 0.0
    %636 = vmatprep.subr.mxu0 0.0
    %637 = vmatpush1.msra.mxu0 0.0
    %638 = vmatprep.subr.mxu0 0.0
    %639 = vmatpush1.msra.mxu0 0.0
    %640 = vmatprep.subr.mxu0 0.0
    %641 = vmatpush1.msra.mxu0 0.0
    %642 = vmatprep.subr.mxu0 0.0
    %643 = vmatpush1.msra.mxu0 0.0
    %644 = vmatprep.subr.mxu0 0.0
    %645 = vmatpush1.msra.mxu0 0.0
    %646 = vmatprep.subr.mxu0 0.0
    %647 = vmatpush1.msra.mxu0 0.0
    %648 = vmatprep.subr.mxu0 0.0
    %649 = vmatpush1.msra.mxu0 0.0
    %650 = vmatprep.subr.mxu0 0.0
    %651 = vmatpush1.msra.mxu0 0.0
    %652 = vmatprep.subr.mxu0 0.0
    %653 = vmatpush1.msra.mxu0 0.0
    %654 = vmatprep.subr.mxu0 0.0
    %655 = vmatpush1.msra.mxu0 0.0
    %656 = vmatprep.subr.mxu0 0.0
    %657 = vmatpush1.msra.mxu0 0.0
    %658 = vmatprep.subr.mxu0 0.0
    %659 = vmatpush1.msra.mxu0 0.0
    %660 = vmatprep.subr.mxu0 0.0
    %661 = vmatpush1.msra.mxu0 0.0
    %662 = vmatprep.subr.mxu0 0.0
    %663 = vmatpush1.msra.mxu0 0.0
    %664 = vmatprep.subr.mxu0 0.0
    %665 = vmatpush1.msra.mxu0 0.0
    %666 = vmatprep.mubr.f32.mxu0 0.0
    %667 = vmatmul.mubr.f32.gmra.mrb[0].mxu0 %v40
    %v668 = vpop.f32.mrb[0].mxu0
    %v669 = vadd.f32 %v599, %v668
    %v670 = vpop.f32.mrb[0].mxu0
    %671 = vdwg.mxu0
    %v672 = vld [vmem:[#allocation7 + $0x200] sm:$0xff]
    %v673 = vld [vmem:[#allocation7 + $0x208] sm:$0xff]
    %v674 = vld [vmem:[#allocation7 + $0x210] sm:$0xf]
    %v676 = vsel %vm175, %v674, 0
    %678 = vmatprep.subr.mxu0 0.0
    %679 = vmatpush1.msra.mxu0 %v672
    %680 = vmatprep.subr.mxu0 0.0
    %681 = vmatpush1.msra.mxu0 %v673
    %682 = vmatprep.subr.mxu0 0.0
    %683 = vmatpush1.msra.mxu0 %v676
    %684 = vmatprep.subr.mxu0 0.0
    %685 = vmatpush1.msra.mxu0 0.0
    %686 = vmatprep.subr.mxu0 0.0
    %687 = vmatpush1.msra.mxu0 0.0
    %688 = vmatprep.subr.mxu0 0.0
    %689 = vmatpush1.msra.mxu0 0.0
    %690 = vmatprep.subr.mxu0 0.0
    %691 = vmatpush1.msra.mxu0 0.0
    %692 = vmatprep.subr.mxu0 0.0
    %693 = vmatpush1.msra.mxu0 0.0
    %694 = vmatprep.subr.mxu0 0.0
    %695 = vmatpush1.msra.mxu0 0.0
    %696 = vmatprep.subr.mxu0 0.0
    %697 = vmatpush1.msra.mxu0 0.0
    %698 = vmatprep.subr.mxu0 0.0
    %699 = vmatpush1.msra.mxu0 0.0
    %700 = vmatprep.subr.mxu0 0.0
    %701 = vmatpush1.msra.mxu0 0.0
    %702 = vmatprep.subr.mxu0 0.0
    %703 = vmatpush1.msra.mxu0 0.0
    %704 = vmatprep.subr.mxu0 0.0
    %705 = vmatpush1.msra.mxu0 0.0
    %706 = vmatprep.subr.mxu0 0.0
    %707 = vmatpush1.msra.mxu0 0.0
    %708 = vmatprep.subr.mxu0 0.0
    %709 = vmatpush1.msra.mxu0 0.0
    %710 = vmatprep.subr.mxu0 0.0
    %711 = vmatpush1.msra.mxu0 0.0
    %712 = vmatprep.subr.mxu0 0.0
    %713 = vmatpush1.msra.mxu0 0.0
    %714 = vmatprep.subr.mxu0 0.0
    %715 = vmatpush1.msra.mxu0 0.0
    %716 = vmatprep.subr.mxu0 0.0
    %717 = vmatpush1.msra.mxu0 0.0
    %718 = vmatprep.subr.mxu0 0.0
    %719 = vmatpush1.msra.mxu0 0.0
    %720 = vmatprep.subr.mxu0 0.0
    %721 = vmatpush1.msra.mxu0 0.0
    %722 = vmatprep.subr.mxu0 0.0
    %723 = vmatpush1.msra.mxu0 0.0
    %724 = vmatprep.subr.mxu0 0.0
    %725 = vmatpush1.msra.mxu0 0.0
    %726 = vmatprep.subr.mxu0 0.0
    %727 = vmatpush1.msra.mxu0 0.0
    %728 = vmatprep.subr.mxu0 0.0
    %729 = vmatpush1.msra.mxu0 0.0
    %730 = vmatprep.subr.mxu0 0.0
    %731 = vmatpush1.msra.mxu0 0.0
    %732 = vmatprep.subr.mxu0 0.0
    %733 = vmatpush1.msra.mxu0 0.0
    %734 = vmatprep.subr.mxu0 0.0
    %735 = vmatpush1.msra.mxu0 0.0
    %736 = vmatprep.subr.mxu0 0.0
    %737 = vmatpush1.msra.mxu0 0.0
    %738 = vmatprep.subr.mxu0 0.0
    %739 = vmatpush1.msra.mxu0 0.0
    %740 = vmatprep.subr.mxu0 0.0
    %741 = vmatpush1.msra.mxu0 0.0
    %742 = vmatprep.mubr.f32.mxu0 0.0
    %743 = vmatmul.mubr.f32.gmra.mrb[0].mxu0 %v324
    %v744 = vpop.f32.mrb[0].mxu0
    %v745 = vadd.f32 0.0, %v744
    %v746 = vpop.f32.mrb[0].mxu0
    %747 = vdwg.mxu0
    %v748 = vadd.f32 %v669, %v745
    %v749 = vld [vmem:[#allocation7 + $0x218] sm:$0xff]
    %v750 = vld [vmem:[#allocation7 + $0x220] sm:$0xff]
    %v751 = vld [vmem:[#allocation7 + $0x228] sm:$0xff]
    %v752 = vld [vmem:[#allocation7 + $0x230] sm:$0xff]
    %v753 = vld [vmem:[#allocation7 + $0x238] sm:$0xff]
    %v754 = vld [vmem:[#allocation7 + $0x240] sm:$0xff]
    %v755 = vld [vmem:[#allocation7 + $0x248] sm:$0xff]
    %v756 = vld [vmem:[#allocation7 + $0x250] sm:$0xff]
    %v757 = vld [vmem:[#allocation7 + $0x258] sm:$0xff]
    %v758 = vld [vmem:[#allocation7 + $0x260] sm:$0xff]
    %v759 = vld [vmem:[#allocation7 + $0x268] sm:$0xff]
    %v760 = vld [vmem:[#allocation7 + $0x270] sm:$0xff]
    %v761 = vld [vmem:[#allocation7 + $0x278] sm:$0xff]
    %v762 = vld [vmem:[#allocation7 + $0x280] sm:$0xff]
    %v763 = vld [vmem:[#allocation7 + $0x288] sm:$0xff]
    %v764 = vld [vmem:[#allocation7 + $0x290] sm:$0xff]
    %765 = vmatprep.subr.mxu0 0.0
    %766 = vmatpush1.msra.mxu0 %v749
    %767 = vmatprep.subr.mxu0 0.0
    %768 = vmatpush1.msra.mxu0 %v750
    %769 = vmatprep.subr.mxu0 0.0
    %770 = vmatpush1.msra.mxu0 %v751
    %771 = vmatprep.subr.mxu0 0.0
    %772 = vmatpush1.msra.mxu0 %v752
    %773 = vmatprep.subr.mxu0 0.0
    %774 = vmatpush1.msra.mxu0 %v753
    %775 = vmatprep.subr.mxu0 0.0
    %776 = vmatpush1.msra.mxu0 %v754
    %777 = vmatprep.subr.mxu0 0.0
    %778 = vmatpush1.msra.mxu0 %v755
    %779 = vmatprep.subr.mxu0 0.0
    %780 = vmatpush1.msra.mxu0 %v756
    %781 = vmatprep.subr.mxu0 0.0
    %782 = vmatpush1.msra.mxu0 %v757
    %783 = vmatprep.subr.mxu0 0.0
    %784 = vmatpush1.msra.mxu0 %v758
    %785 = vmatprep.subr.mxu0 0.0
    %786 = vmatpush1.msra.mxu0 %v759
    %787 = vmatprep.subr.mxu0 0.0
    %788 = vmatpush1.msra.mxu0 %v760
    %789 = vmatprep.subr.mxu0 0.0
    %790 = vmatpush1.msra.mxu0 %v761
    %791 = vmatprep.subr.mxu0 0.0
    %792 = vmatpush1.msra.mxu0 %v762
    %793 = vmatprep.subr.mxu0 0.0
    %794 = vmatpush1.msra.mxu0 %v763
    %795 = vmatprep.subr.mxu0 0.0
    %796 = vmatpush1.msra.mxu0 %v764
    %797 = vmatprep.subr.mxu0 0.0
    %798 = vmatpush1.msra.mxu0 0.0
    %799 = vmatprep.subr.mxu0 0.0
    %800 = vmatpush1.msra.mxu0 0.0
    %801 = vmatprep.subr.mxu0 0.0
    %802 = vmatpush1.msra.mxu0 0.0
    %803 = vmatprep.subr.mxu0 0.0
    %804 = vmatpush1.msra.mxu0 0.0
    %805 = vmatprep.subr.mxu0 0.0
    %806 = vmatpush1.msra.mxu0 0.0
    %807 = vmatprep.subr.mxu0 0.0
    %808 = vmatpush1.msra.mxu0 0.0
    %809 = vmatprep.subr.mxu0 0.0
    %810 = vmatpush1.msra.mxu0 0.0
    %811 = vmatprep.subr.mxu0 0.0
    %812 = vmatpush1.msra.mxu0 0.0
    %813 = vmatprep.subr.mxu0 0.0
    %814 = vmatpush1.msra.mxu0 0.0
    %815 = vmatprep.subr.mxu0 0.0
    %816 = vmatpush1.msra.mxu0 0.0
    %817 = vmatprep.subr.mxu0 0.0
    %818 = vmatpush1.msra.mxu0 0.0
    %819 = vmatprep.subr.mxu0 0.0
    %820 = vmatpush1.msra.mxu0 0.0
    %821 = vmatprep.subr.mxu0 0.0
    %822 = vmatpush1.msra.mxu0 0.0
    %823 = vmatprep.subr.mxu0 0.0
    %824 = vmatpush1.msra.mxu0 0.0
    %825 = vmatprep.subr.mxu0 0.0
    %826 = vmatpush1.msra.mxu0 0.0
    %827 = vmatprep.subr.mxu0 0.0
    %828 = vmatpush1.msra.mxu0 0.0
    %829 = vmatprep.mubr.f32.mxu0 0.0
    %830 = vmatmul.mubr.f32.gmra.mrb[0].mxu0 %v507
    %v831 = vpop.f32.mrb[0].mxu0
    %v832 = vadd.f32 0.0, %v831
    %v833 = vpop.f32.mrb[0].mxu0
    %834 = vdwg.mxu0
    %v835 = vadd.f32 %v748, %v832
    %v836 = vld [vmem:[#allocation7 + $0x298] sm:$0x1]
    %v837 = vlaneseq
    %v838 = vshrl.u32 %v837, 7
    %v839 = vsub.s32 0, %v838
    %v840 = vrot.slane %v836, %v839
    %v841 = vadd.f32 %v835, %v840
    %v842 = vtanh.pop %v841
    %v843 = vld [vmem:[#allocation7 + $0x2a0] sm:$0xff]
    %v844 = vld [vmem:[#allocation7 + $0x2a8] sm:$0xff]
    %v845 = vld [vmem:[#allocation7 + $0x2b0] sm:$0xf]
    %v846 = vld [vmem:[#allocation7 + $0x2b8] sm:$0x1]
    %v847 = vlaneseq
    %v848 = vshrl.u32 %v847, 7
    %v849 = vsub.s32 0, %v848
    %v850 = vrot.slane %v846, %v849
    %v852 = vsel %vm172, %v842, 0
    %v855 = vsel %vm175, %v845, 0
    %857 = vmatprep.subr.mxu0 0.0
    %858 = vmatpush1.msra.mxu0 %v843
    %859 = vmatprep.subr.mxu0 0.0
    %860 = vmatpush1.msra.mxu0 %v844
    %861 = vmatprep.subr.mxu0 0.0
    %862 = vmatpush1.msra.mxu0 %v855
    %863 = vmatprep.subr.mxu0 0.0
    %864 = vmatpush1.msra.mxu0 0.0
    %865 = vmatprep.subr.mxu0 0.0
    %866 = vmatpush1.msra.mxu0 0.0
    %867 = vmatprep.subr.mxu0 0.0
    %868 = vmatpush1.msra.mxu0 0.0
    %869 = vmatprep.subr.mxu0 0.0
    %870 = vmatpush1.msra.mxu0 0.0
    %871 = vmatprep.subr.mxu0 0.0
    %872 = vmatpush1.msra.mxu0 0.0
    %873 = vmatprep.subr.mxu0 0.0
    %874 = vmatpush1.msra.mxu0 0.0
    %875 = vmatprep.subr.mxu0 0.0
    %876 = vmatpush1.msra.mxu0 0.0
    %877 = vmatprep.subr.mxu0 0.0
    %878 = vmatpush1.msra.mxu0 0.0
    %879 = vmatprep.subr.mxu0 0.0
    %880 = vmatpush1.msra.mxu0 0.0
    %881 = vmatprep.subr.mxu0 0.0
    %882 = vmatpush1.msra.mxu0 0.0
    %883 = vmatprep.subr.mxu0 0.0
    %884 = vmatpush1.msra.mxu0 0.0
    %885 = vmatprep.subr.mxu0 0.0
    %886 = vmatpush1.msra.mxu0 0.0
    %887 = vmatprep.subr.mxu0 0.0
    %888 = vmatpush1.msra.mxu0 0.0
    %889 = vmatprep.subr.mxu0 0.0
    %890 = vmatpush1.msra.mxu0 0.0
    %891 = vmatprep.subr.mxu0 0.0
    %892 = vmatpush1.msra.mxu0 0.0
    %893 = vmatprep.subr.mxu0 0.0
    %894 = vmatpush1.msra.mxu0 0.0
    %895 = vmatprep.subr.mxu0 0.0
    %896 = vmatpush1.msra.mxu0 0.0
    %897 = vmatprep.subr.mxu0 0.0
    %898 = vmatpush1.msra.mxu0 0.0
    %899 = vmatprep.subr.mxu0 0.0
    %900 = vmatpush1.msra.mxu0 0.0
    %901 = vmatprep.subr.mxu0 0.0
    %902 = vmatpush1.msra.mxu0 0.0
    %903 = vmatprep.subr.mxu0 0.0
    %904 = vmatpush1.msra.mxu0 0.0
    %905 = vmatprep.subr.mxu0 0.0
    %906 = vmatpush1.msra.mxu0 0.0
    %907 = vmatprep.subr.mxu0 0.0
    %908 = vmatpush1.msra.mxu0 0.0
    %909 = vmatprep.subr.mxu0 0.0
    %910 = vmatpush1.msra.mxu0 0.0
    %911 = vmatprep.subr.mxu0 0.0
    %912 = vmatpush1.msra.mxu0 0.0
    %913 = vmatprep.subr.mxu0 0.0
    %914 = vmatpush1.msra.mxu0 0.0
    %915 = vmatprep.subr.mxu0 0.0
    %916 = vmatpush1.msra.mxu0 0.0
    %917 = vmatprep.subr.mxu0 0.0
    %918 = vmatpush1.msra.mxu0 0.0
    %919 = vmatprep.subr.mxu0 0.0
    %920 = vmatpush1.msra.mxu0 0.0
    %921 = vmatprep.mubr.f32.mxu0 0.0
    %922 = vmatmul.mubr.f32.gmra.mrb[0].mxu0 %v852
    %v923 = vpop.f32.mrb[0].mxu0
    %v924 = vadd.f32 %v850, %v923
    %v925 = vpop.f32.mrb[0].mxu0
    %926 = vdwg.mxu0
    %927 = vst [vmem:[#allocation9] sm:$0xff] %v924
    // Predicated region
    $region18: #{tpu_custom_call.1} parent=1 // pred_check
      _
    $region19: #{tpu_custom_call.1} parent=1 // pred_check_branch
      %929 = sbr.rel (0) target = $region21
    $region20: #{tpu_custom_call.1} parent=1 // pred_region
      %s931 = ssub.s32 128, 128
      %932 = vsyncadd [#allocation6], %s931
      %s934 = sshll.u32 [#allocation9], 4
      %s935 = int_to_ptr.vmem [resolvable:$true] %s934
      %937 = dma.vmem_to_hbm [thread:$0]  %s935, 128, %s3, [#allocation6]
    $region21: #{tpu_custom_call.1} parent=1 // pred_fallthru
      _
    // Predicated region
    $region22: #{tpu_custom_call.1} parent=1 // pred_check
      _
    $region23: #{tpu_custom_call.1} parent=1 // pred_check_branch
      %939 = sbr.rel (0) target = $region25
    $region24: #{tpu_custom_call.1} parent=1 // pred_region
      %940 = dma.done [#allocation6], 128
    $region25: #{tpu_custom_call.1} parent=1 // pred_fallthru
      _
    %941 = vsyncpa [#allocation5], 1
    %942 = vsyncpa [#allocation8], 1
    %943 = vsyncpa [#allocation6], 1

</llo_original>
